<compile_context>
chip_gen: v5e
topology: v5e:2x2
jax: 0.10.0
libtpu: 0.0.40
codegen_flags: <defaults>
</compile_context>

<pallas_src>
import functools
import math

import jax
import jax.numpy as jnp
from jax import lax
from jax.experimental import pallas as pl
from jax.experimental.pallas import tpu as pltpu


def _mha_kernel(x_ref, w_ref, o_ref, *, num_heads, d_out, scale):
    # x_ref : (T, d_in)            bf16, current batch element (leading dim squeezed)
    # w_ref : (d_in, 3*H*d_out)    bf16, packed [Q heads | K heads | V heads]
    # o_ref : (T, H*d_out)         f32 output slot (leading batch dim squeezed)
    x = x_ref[...]                      # (T, d_in) bf16
    w = w_ref[...]                      # (d_in, 3*H*d_out) bf16

    # Single fused projection for Q, K, V of every head (MXU, f32 accumulate).
    qkv = jnp.dot(x, w, preferred_element_type=jnp.float32)   # (T, 3*H*d_out) f32

    T = qkv.shape[0]
    hd = num_heads * d_out
    q_all = qkv[:, 0 * hd:1 * hd]       # (T, H*d_out)
    k_all = qkv[:, 1 * hd:2 * hd]
    v_all = qkv[:, 2 * hd:3 * hd]

    # causal mask: positions j > i masked (same as torch.triu(..., diagonal=1))
    row = lax.broadcasted_iota(jnp.int32, (T, T), 0)
    col = lax.broadcasted_iota(jnp.int32, (T, T), 1)
    causal = col > row

    outs = []
    for h in range(num_heads):          # static, unrolled (H is small)
        sl = slice(h * d_out, (h + 1) * d_out)
        q = q_all[:, sl]                # (T, d_out) f32
        k = k_all[:, sl]
        v = v_all[:, sl]

        # bf16 MXU operands, f32 accumulation; softmax math stays in f32.
        s = jnp.dot(q.astype(jnp.bfloat16), k.astype(jnp.bfloat16).T,
                    preferred_element_type=jnp.float32) * scale      # (T, T)
        s = jnp.where(causal, -jnp.inf, s)

        m = jnp.max(s, axis=-1, keepdims=True)
        e = jnp.exp(s - m)
        denom = jnp.sum(e, axis=-1, keepdims=True)
        p = e * pl.reciprocal(denom, approx=True)                    # (T, T) f32

        outs.append(jnp.dot(p.astype(jnp.bfloat16), v.astype(jnp.bfloat16),
                            preferred_element_type=jnp.float32))      # (T, d_out)

    # Heads concatenated on the last axis -> single lane-dense store.
    o_ref[...] = jnp.concatenate(outs, axis=-1).astype(o_ref.dtype)


def multi_head_attention(x, wq, wk, wv):
    """x: (B, T, d_in); wq/wk/wv: (H, d_in, d_out)  ->  (B, T, H*d_out)"""
    B, T, d_in = x.shape
    H, _, d_out = wq.shape
    scale = 1.0 / math.sqrt(d_out)

    # Pack weights: (H, d_in, d_out) -> (d_in, H*d_out); concat Q|K|V -> (d_in, 3*H*d_out).
    wq_p = jnp.transpose(wq, (1, 0, 2)).reshape(d_in, H * d_out)
    wk_p = jnp.transpose(wk, (1, 0, 2)).reshape(d_in, H * d_out)
    wv_p = jnp.transpose(wv, (1, 0, 2)).reshape(d_in, H * d_out)
    w_qkv = jnp.concatenate([wq_p, wk_p, wv_p], axis=-1).astype(jnp.bfloat16)

    x_bf16 = x.astype(jnp.bfloat16)

    kernel = functools.partial(_mha_kernel, num_heads=H, d_out=d_out, scale=scale)

    out = pl.pallas_call(
        kernel,
        out_shape=jax.ShapeDtypeStruct((B, T, H * d_out), x.dtype),
        grid_spec=pltpu.PrefetchScalarGridSpec(
            num_scalar_prefetch=0,
            grid=(B,),
            in_specs=[
                # current batch element, leading dim squeezed -> kernel sees (T, d_in)
                pl.BlockSpec((pl.Squeezed(), T, d_in), lambda b: (b, 0, 0)),
                # packed QKV weights, whole array resident in VMEM
                pl.BlockSpec((d_in, 3 * H * d_out), lambda b: (0, 0)),
            ],
            # final layout written directly: (B, T, H*d_out), heads on last axis
            out_specs=pl.BlockSpec((pl.Squeezed(), T, H * d_out), lambda b: (b, 0, 0)),
        ),
        compiler_params=pltpu.CompilerParams(
            dimension_semantics=("parallel",),
        ),
    )(x_bf16, w_qkv)

    return out


def _reference(x, wq, wk, wv):
    """Pure-JAX f32 reference matching the PyTorch module (eval mode)."""
    H, _, d_out = wq.shape
    outs = []
    for h in range(H):
        q = x @ wq[h]
        k = x @ wk[h]
        v = x @ wv[h]
        s = (q @ jnp.swapaxes(k, 1, 2)) / math.sqrt(d_out)
        T = s.shape[-1]
        mask = jnp.triu(jnp.ones((T, T), dtype=bool), k=1)
        s = jnp.where(mask, -jnp.inf, s)
        w = jax.nn.softmax(s, axis=-1)
        outs.append(w @ v)
    return jnp.concatenate(outs, axis=-1)


if __name__ == "__main__":
    # module config: d_in=32, d_out=16, context_length=8, dropout=0.0, num_heads=4
    B, T, d_in, d_out, H = 2, 8, 32, 16, 4

    key = jax.random.PRNGKey(0)
    kx, kq, kk, kv = jax.random.split(key, 4)
    x = jax.random.normal(kx, (B, T, d_in), dtype=jnp.float32)
    # deterministic per-head projection weights (stacked, pre-transposed: (H, d_in, d_out))
    wq = jax.random.normal(kq, (H, d_in, d_out), dtype=jnp.float32) * 0.1
    wk = jax.random.normal(kk, (H, d_in, d_out), dtype=jnp.float32) * 0.1
    wv = jax.random.normal(kv, (H, d_in, d_out), dtype=jnp.float32) * 0.1

    out = multi_head_attention(x, wq, wk, wv)
    out = jax.block_until_ready(out)

    ref = _reference(x, wq, wk, wv)
    assert out.shape == (B, T, H * d_out)
    # bf16 MXU operands (f32 accumulate) + approx reciprocal -> loosened tolerance.
    assert jnp.allclose(out, ref, atol=5e-2, rtol=5e-2), "mismatch vs. reference"

    print("KERNEL_OK")
</pallas_src>

<mosaic_0001>
module attributes {stable_mosaic.version = 11 : i64} {
  func.func @_mha_kernel(%arg0: i32, %arg1: memref<1x8x32xbf16, #tpu.memory_space<vmem>>, %arg2: memref<32x192xbf16, #tpu.memory_space<vmem>>, %arg3: memref<1x8x64xf32, #tpu.memory_space<vmem>>) attributes {dimension_semantics = [#tpu.dimension_semantics<parallel>], iteration_bounds = array<i64: 2>, scalar_prefetch = 0 : i64, scratch_operands = 0 : i64, tpu.core_type = #tpu.core_type<tc>, window_params = [{transform_indices = @transform_0, window_bounds = array<i64: 1, 8, 32>}, {pipeline_mode = #tpu.pipeline_mode<synchronous>, transform_indices = @transform_1, window_bounds = array<i64: 32, 192>}, {transform_indices = @transform_2, window_bounds = array<i64: 1, 8, 64>}]} {
    %c0 = arith.constant 0 : index
    %c0_0 = arith.constant 0 : index
    %c0_1 = arith.constant 0 : index
    %0 = vector.load %arg1[%c0, %c0_0, %c0_1] : memref<1x8x32xbf16, #tpu.memory_space<vmem>>, vector<1x8x32xbf16>
    %1 = vector.shape_cast %0 : vector<1x8x32xbf16> to vector<8x32xbf16>
    %c0_2 = arith.constant 0 : index
    %c0_3 = arith.constant 0 : index
    %2 = vector.load %arg2[%c0_2, %c0_3] : memref<32x192xbf16, #tpu.memory_space<vmem>>, vector<32x192xbf16>
    %cst = arith.constant dense<0.000000e+00> : vector<8x192xf32>
    %3 = tpu.matmul %1, %2, %cst {dimension_numbers = #tpu.dot_dimension_numbers<[1], [0], [0], [1], [0, 0, 1, 1], [], []>} : vector<8x32xbf16>, vector<32x192xbf16>, vector<8x192xf32> -> vector<8x192xf32>
    %4 = vector.extract_strided_slice %3 {offsets = [0, 0], sizes = [8, 64], strides = [1, 1]} : vector<8x192xf32> to vector<8x64xf32>
    %5 = vector.extract_strided_slice %3 {offsets = [0, 64], sizes = [8, 64], strides = [1, 1]} : vector<8x192xf32> to vector<8x64xf32>
    %6 = vector.extract_strided_slice %3 {offsets = [0, 128], sizes = [8, 64], strides = [1, 1]} : vector<8x192xf32> to vector<8x64xf32>
    %7 = tpu.iota {dimensions = array<i32: 0>} : vector<8x8xi32>
    %8 = tpu.iota {dimensions = array<i32: 1>} : vector<8x8xi32>
    %9 = arith.cmpi sgt, %8, %7 : vector<8x8xi32>
    %10 = vector.extract_strided_slice %4 {offsets = [0, 0], sizes = [8, 16], strides = [1, 1]} : vector<8x64xf32> to vector<8x16xf32>
    %11 = vector.extract_strided_slice %5 {offsets = [0, 0], sizes = [8, 16], strides = [1, 1]} : vector<8x64xf32> to vector<8x16xf32>
    %12 = vector.extract_strided_slice %6 {offsets = [0, 0], sizes = [8, 16], strides = [1, 1]} : vector<8x64xf32> to vector<8x16xf32>
    %13 = arith.truncf %10 : vector<8x16xf32> to vector<8x16xbf16>
    %14 = arith.truncf %11 : vector<8x16xf32> to vector<8x16xbf16>
    %15 = tpu.transpose %14, [1, 0] : vector<8x16xbf16> -> vector<16x8xbf16>
    %cst_4 = arith.constant dense<0.000000e+00> : vector<8x8xf32>
    %16 = tpu.matmul %13, %15, %cst_4 {dimension_numbers = #tpu.dot_dimension_numbers<[1], [0], [0], [1], [0, 0, 1, 1], [], []>} : vector<8x16xbf16>, vector<16x8xbf16>, vector<8x8xf32> -> vector<8x8xf32>
    %cst_5 = arith.constant 2.500000e-01 : f32
    %17 = vector.broadcast %cst_5 : f32 to vector<8x8xf32>
    %18 = arith.mulf %16, %17 : vector<8x8xf32>
    %cst_6 = arith.constant 0xFF800000 : f32
    %19 = vector.broadcast %cst_6 : f32 to vector<8x8xf32>
    %20 = arith.select %9, %19, %18 : vector<8x8xi1>, vector<8x8xf32>
    %cst_7 = arith.constant dense<0xFF800000> : vector<8xf32>
    %21 = vector.multi_reduction <maximumf>, %20, %cst_7 [1] : vector<8x8xf32> to vector<8xf32>
    %22 = vector.shape_cast %21 : vector<8xf32> to vector<8x1xf32>
    %23 = vector.broadcast %22 : vector<8x1xf32> to vector<8x8xf32>
    %24 = arith.subf %20, %23 : vector<8x8xf32>
    %25 = math.exp %24 : vector<8x8xf32>
    %cst_8 = arith.constant dense<0.000000e+00> : vector<8xf32>
    %26 = vector.multi_reduction <add>, %25, %cst_8 [1] : vector<8x8xf32> to vector<8xf32>
    %27 = vector.shape_cast %26 : vector<8xf32> to vector<8x1xf32>
    %28 = tpu.reciprocal %27 {approx = true} : vector<8x1xf32> -> vector<8x1xf32>
    %29 = vector.broadcast %28 : vector<8x1xf32> to vector<8x8xf32>
    %30 = arith.mulf %25, %29 : vector<8x8xf32>
    %31 = arith.truncf %30 : vector<8x8xf32> to vector<8x8xbf16>
    %32 = arith.truncf %12 : vector<8x16xf32> to vector<8x16xbf16>
    %cst_9 = arith.constant dense<0.000000e+00> : vector<8x16xf32>
    %33 = tpu.matmul %31, %32, %cst_9 {dimension_numbers = #tpu.dot_dimension_numbers<[1], [0], [0], [1], [0, 0, 1, 1], [], []>} : vector<8x8xbf16>, vector<8x16xbf16>, vector<8x16xf32> -> vector<8x16xf32>
    %34 = vector.extract_strided_slice %4 {offsets = [0, 16], sizes = [8, 16], strides = [1, 1]} : vector<8x64xf32> to vector<8x16xf32>
    %35 = vector.extract_strided_slice %5 {offsets = [0, 16], sizes = [8, 16], strides = [1, 1]} : vector<8x64xf32> to vector<8x16xf32>
    %36 = vector.extract_strided_slice %6 {offsets = [0, 16], sizes = [8, 16], strides = [1, 1]} : vector<8x64xf32> to vector<8x16xf32>
    %37 = arith.truncf %34 : vector<8x16xf32> to vector<8x16xbf16>
    %38 = arith.truncf %35 : vector<8x16xf32> to vector<8x16xbf16>
    %39 = tpu.transpose %38, [1, 0] : vector<8x16xbf16> -> vector<16x8xbf16>
    %cst_10 = arith.constant dense<0.000000e+00> : vector<8x8xf32>
    %40 = tpu.matmul %37, %39, %cst_10 {dimension_numbers = #tpu.dot_dimension_numbers<[1], [0], [0], [1], [0, 0, 1, 1], [], []>} : vector<8x16xbf16>, vector<16x8xbf16>, vector<8x8xf32> -> vector<8x8xf32>
    %cst_11 = arith.constant 2.500000e-01 : f32
    %41 = vector.broadcast %cst_11 : f32 to vector<8x8xf32>
    %42 = arith.mulf %40, %41 : vector<8x8xf32>
    %cst_12 = arith.constant 0xFF800000 : f32
    %43 = vector.broadcast %cst_12 : f32 to vector<8x8xf32>
    %44 = arith.select %9, %43, %42 : vector<8x8xi1>, vector<8x8xf32>
    %cst_13 = arith.constant dense<0xFF800000> : vector<8xf32>
    %45 = vector.multi_reduction <maximumf>, %44, %cst_13 [1] : vector<8x8xf32> to vector<8xf32>
    %46 = vector.shape_cast %45 : vector<8xf32> to vector<8x1xf32>
    %47 = vector.broadcast %46 : vector<8x1xf32> to vector<8x8xf32>
    %48 = arith.subf %44, %47 : vector<8x8xf32>
    %49 = math.exp %48 : vector<8x8xf32>
    %cst_14 = arith.constant dense<0.000000e+00> : vector<8xf32>
    %50 = vector.multi_reduction <add>, %49, %cst_14 [1] : vector<8x8xf32> to vector<8xf32>
    %51 = vector.shape_cast %50 : vector<8xf32> to vector<8x1xf32>
    %52 = tpu.reciprocal %51 {approx = true} : vector<8x1xf32> -> vector<8x1xf32>
    %53 = vector.broadcast %52 : vector<8x1xf32> to vector<8x8xf32>
    %54 = arith.mulf %49, %53 : vector<8x8xf32>
    %55 = arith.truncf %54 : vector<8x8xf32> to vector<8x8xbf16>
    %56 = arith.truncf %36 : vector<8x16xf32> to vector<8x16xbf16>
    %cst_15 = arith.constant dense<0.000000e+00> : vector<8x16xf32>
    %57 = tpu.matmul %55, %56, %cst_15 {dimension_numbers = #tpu.dot_dimension_numbers<[1], [0], [0], [1], [0, 0, 1, 1], [], []>} : vector<8x8xbf16>, vector<8x16xbf16>, vector<8x16xf32> -> vector<8x16xf32>
    %58 = vector.extract_strided_slice %4 {offsets = [0, 32], sizes = [8, 16], strides = [1, 1]} : vector<8x64xf32> to vector<8x16xf32>
    %59 = vector.extract_strided_slice %5 {offsets = [0, 32], sizes = [8, 16], strides = [1, 1]} : vector<8x64xf32> to vector<8x16xf32>
    %60 = vector.extract_strided_slice %6 {offsets = [0, 32], sizes = [8, 16], strides = [1, 1]} : vector<8x64xf32> to vector<8x16xf32>
    %61 = arith.truncf %58 : vector<8x16xf32> to vector<8x16xbf16>
    %62 = arith.truncf %59 : vector<8x16xf32> to vector<8x16xbf16>
    %63 = tpu.transpose %62, [1, 0] : vector<8x16xbf16> -> vector<16x8xbf16>
    %cst_16 = arith.constant dense<0.000000e+00> : vector<8x8xf32>
    %64 = tpu.matmul %61, %63, %cst_16 {dimension_numbers = #tpu.dot_dimension_numbers<[1], [0], [0], [1], [0, 0, 1, 1], [], []>} : vector<8x16xbf16>, vector<16x8xbf16>, vector<8x8xf32> -> vector<8x8xf32>
    %cst_17 = arith.constant 2.500000e-01 : f32
    %65 = vector.broadcast %cst_17 : f32 to vector<8x8xf32>
    %66 = arith.mulf %64, %65 : vector<8x8xf32>
    %cst_18 = arith.constant 0xFF800000 : f32
    %67 = vector.broadcast %cst_18 : f32 to vector<8x8xf32>
    %68 = arith.select %9, %67, %66 : vector<8x8xi1>, vector<8x8xf32>
    %cst_19 = arith.constant dense<0xFF800000> : vector<8xf32>
    %69 = vector.multi_reduction <maximumf>, %68, %cst_19 [1] : vector<8x8xf32> to vector<8xf32>
    %70 = vector.shape_cast %69 : vector<8xf32> to vector<8x1xf32>
    %71 = vector.broadcast %70 : vector<8x1xf32> to vector<8x8xf32>
    %72 = arith.subf %68, %71 : vector<8x8xf32>
    %73 = math.exp %72 : vector<8x8xf32>
    %cst_20 = arith.constant dense<0.000000e+00> : vector<8xf32>
    %74 = vector.multi_reduction <add>, %73, %cst_20 [1] : vector<8x8xf32> to vector<8xf32>
    %75 = vector.shape_cast %74 : vector<8xf32> to vector<8x1xf32>
    %76 = tpu.reciprocal %75 {approx = true} : vector<8x1xf32> -> vector<8x1xf32>
    %77 = vector.broadcast %76 : vector<8x1xf32> to vector<8x8xf32>
    %78 = arith.mulf %73, %77 : vector<8x8xf32>
    %79 = arith.truncf %78 : vector<8x8xf32> to vector<8x8xbf16>
    %80 = arith.truncf %60 : vector<8x16xf32> to vector<8x16xbf16>
    %cst_21 = arith.constant dense<0.000000e+00> : vector<8x16xf32>
    %81 = tpu.matmul %79, %80, %cst_21 {dimension_numbers = #tpu.dot_dimension_numbers<[1], [0], [0], [1], [0, 0, 1, 1], [], []>} : vector<8x8xbf16>, vector<8x16xbf16>, vector<8x16xf32> -> vector<8x16xf32>
    %82 = vector.extract_strided_slice %4 {offsets = [0, 48], sizes = [8, 16], strides = [1, 1]} : vector<8x64xf32> to vector<8x16xf32>
    %83 = vector.extract_strided_slice %5 {offsets = [0, 48], sizes = [8, 16], strides = [1, 1]} : vector<8x64xf32> to vector<8x16xf32>
    %84 = vector.extract_strided_slice %6 {offsets = [0, 48], sizes = [8, 16], strides = [1, 1]} : vector<8x64xf32> to vector<8x16xf32>
    %85 = arith.truncf %82 : vector<8x16xf32> to vector<8x16xbf16>
    %86 = arith.truncf %83 : vector<8x16xf32> to vector<8x16xbf16>
    %87 = tpu.transpose %86, [1, 0] : vector<8x16xbf16> -> vector<16x8xbf16>
    %cst_22 = arith.constant dense<0.000000e+00> : vector<8x8xf32>
    %88 = tpu.matmul %85, %87, %cst_22 {dimension_numbers = #tpu.dot_dimension_numbers<[1], [0], [0], [1], [0, 0, 1, 1], [], []>} : vector<8x16xbf16>, vector<16x8xbf16>, vector<8x8xf32> -> vector<8x8xf32>
    %cst_23 = arith.constant 2.500000e-01 : f32
    %89 = vector.broadcast %cst_23 : f32 to vector<8x8xf32>
    %90 = arith.mulf %88, %89 : vector<8x8xf32>
    %cst_24 = arith.constant 0xFF800000 : f32
    %91 = vector.broadcast %cst_24 : f32 to vector<8x8xf32>
    %92 = arith.select %9, %91, %90 : vector<8x8xi1>, vector<8x8xf32>
    %cst_25 = arith.constant dense<0xFF800000> : vector<8xf32>
    %93 = vector.multi_reduction <maximumf>, %92, %cst_25 [1] : vector<8x8xf32> to vector<8xf32>
    %94 = vector.shape_cast %93 : vector<8xf32> to vector<8x1xf32>
    %95 = vector.broadcast %94 : vector<8x1xf32> to vector<8x8xf32>
    %96 = arith.subf %92, %95 : vector<8x8xf32>
    %97 = math.exp %96 : vector<8x8xf32>
    %cst_26 = arith.constant dense<0.000000e+00> : vector<8xf32>
    %98 = vector.multi_reduction <add>, %97, %cst_26 [1] : vector<8x8xf32> to vector<8xf32>
    %99 = vector.shape_cast %98 : vector<8xf32> to vector<8x1xf32>
    %100 = tpu.reciprocal %99 {approx = true} : vector<8x1xf32> -> vector<8x1xf32>
    %101 = vector.broadcast %100 : vector<8x1xf32> to vector<8x8xf32>
    %102 = arith.mulf %97, %101 : vector<8x8xf32>
    %103 = arith.truncf %102 : vector<8x8xf32> to vector<8x8xbf16>
    %104 = arith.truncf %84 : vector<8x16xf32> to vector<8x16xbf16>
    %cst_27 = arith.constant dense<0.000000e+00> : vector<8x16xf32>
    %105 = tpu.matmul %103, %104, %cst_27 {dimension_numbers = #tpu.dot_dimension_numbers<[1], [0], [0], [1], [0, 0, 1, 1], [], []>} : vector<8x8xbf16>, vector<8x16xbf16>, vector<8x16xf32> -> vector<8x16xf32>
    %106 = tpu.concatenate %33, %57, %81, %105 in 1 : vector<8x16xf32>, vector<8x16xf32>, vector<8x16xf32>, vector<8x16xf32> -> vector<8x64xf32>
    %c0_28 = arith.constant 0 : index
    %c0_29 = arith.constant 0 : index
    %c0_30 = arith.constant 0 : index
    %107 = vector.load %arg3[%c0_28, %c0_29, %c0_30] : memref<1x8x64xf32, #tpu.memory_space<vmem>>, vector<1x8x64xf32>
    %108 = vector.shape_cast %107 : vector<1x8x64xf32> to vector<8x64xf32>
    %109 = vector.shape_cast %106 : vector<8x64xf32> to vector<1x8x64xf32>
    tpu.vector_store %arg3[%c0_28, %c0_29, %c0_30], %109 {strides = array<i32>} : memref<1x8x64xf32, #tpu.memory_space<vmem>>, vector<1x8x64xf32>,
    return
  }
  func.func @transform_0(%arg0: i32) -> (i32, i32, i32) {
    %c0_i32 = arith.constant 0 : i32
    %c0_i32_0 = arith.constant 0 : i32
    %c0_i32_1 = arith.constant 0 : i32
    return %arg0, %c0_i32, %c0_i32_0 : i32, i32, i32
  }
  func.func @transform_1(%arg0: i32) -> (i32, i32) {
    %c0_i32 = arith.constant 0 : i32
    %c0_i32_0 = arith.constant 0 : i32
    %c0_i32_1 = arith.constant 0 : i32
    return %c0_i32, %c0_i32_0 : i32, i32
  }
  func.func @transform_2(%arg0: i32) -> (i32, i32, i32) {
    %c0_i32 = arith.constant 0 : i32
    %c0_i32_0 = arith.constant 0 : i32
    %c0_i32_1 = arith.constant 0 : i32
    return %arg0, %c0_i32, %c0_i32_0 : i32, i32, i32
  }
}

</mosaic_0001>

<llo_original>
// kernel: tpu_custom_call.1
$region0: #{tpu_custom_call.1}
  #allocation0 [shape = 'u32[]', space=smem, size = 0x4, offset = 0x4, fixed_abs, tag = 'smem constant byte address 0x4 - core index']
  #allocation1 [shape = 'u32[72,128]{1,0:T(1,128)}', space=vmem, size = 0x9000, scoped, tag = 'internal scratch']
  %s0 = inlined_call_operand.hbm [shape: bf16[2,8,32], index: 0, kind: input, shape index: {}]
  %s1 = inlined_call_operand.hbm [shape: bf16[32,192], index: 1, kind: input, shape index: {}]
  %s2 = inlined_call_operand.hbm [shape: f32[2,8,64], index: 2, kind: output, shape index: {}]
  %s3 = sld [smem:[#allocation0]]
  $region49: #{tpu_custom_call.1} parent=0
    _
  %s5 = ssub.s32 1, %s3
  %s6 = scalar_select 0, %s5, %s3
  $region1: #{tpu_custom_call.1} parent=0
    #allocation2 [shape = 'u8[4096]{0}', space=vmem, size = 0x1000, scoped, tag = 'input window, operand 0']
    #allocation3 [shape = 's32[2]{0}', space=sflag, size = 0x8, scoped, tag = 'scoped memory for tpu_custom_call.1']
    #allocation4 [shape = 's32[2]{0}', space=sflag, size = 0x8, scoped, tag = 'scoped memory for tpu_custom_call.1']
    #allocation5 [shape = 'u8[16384]{0}', space=vmem, size = 0x4000, scoped, tag = 'input window, operand 1, single buffered']
    #allocation6 [shape = 's32[1]{0}', space=sflag, size = 0x4, scoped, tag = 'scoped memory for tpu_custom_call.1']
    #allocation7 [shape = 'u8[8192]{0}', space=vmem, size = 0x2000, scoped, tag = 'output window, operand 0']
    %7 = vsyncpa [#allocation3], 0
    %s8 = scalar_lea.sflag [#allocation3], 1
    %9 = vsyncpa %s8, 0
    %10 = vsyncpa [#allocation6], 0
    %11 = vsyncpa [#allocation4], 0
    %s12 = scalar_lea.sflag [#allocation4], 1
    %13 = vsyncpa %s12, 0
    loop: start=0, step=1, limit=4
    $region2: #{tpu_custom_call.1} parent=1 // loop_pre_header
      _
    $region3: #{tpu_custom_call.1} parent=1 // loop_header
      %s15 = sphi 0, %s19
      %p16 = scmp.ge.s32.totalorder %s15, 4
      %s25 = sphi 0, %s27
      %s28 = sphi 0, %s25
      %s29 = sphi 0, %s28
      %s45 = sphi 0, %s29
      %s49 = sphi 0, %s49
      %s51 = sphi 0, %s49
      %s52 = sphi 0, %s51
      %s66 = sphi 0, %s52
      %s72 = sphi 0, %s74
      %s75 = sphi 0, %s72
      %s76 = sphi 0, %s75
      %s92 = sphi 0, %s76
    $region4: #{tpu_custom_call.1} parent=1 // loop_header_branch
      %18 = sbr.rel (%p16) target = $region8
    $region5: #{tpu_custom_call.1} parent=1 // loop_body
      %s20 = ssub.s32 %s15, 1
      %s21 = ssub.s32 %s15, 2
      %s22 = sadd.s32 %s15, 1
      %s23 = ssub.s32 %s15, %s22
      %p24 = scmp.eq.s32.totalorder %s23, 0
      %s26 = sadd.s32 %s25, 1
      %s27 = scalar_select %p24, %s25, %s26
      %p30 = pneg %p24
      %p31 = scmp.eq.s32.totalorder %s15, 1
      %p32 = por %p30, %p31
      %p33 = scmp.ne.s32.totalorder %s25, %s28
      %p34 = scmp.eq.s32.totalorder %s15, 0
      %p35 = por %p33, %p34
      %p36 = scmp.ne.s32.totalorder %s25, %s28
      %p37 = scmp.eq.s32.totalorder %s20, 1
      %p38 = por %p36, %p37
      %p39 = scmp.ne.s32.totalorder %s28, %s29
      %p40 = scmp.eq.s32.totalorder %s20, 0
      %p41 = por %p39, %p40
      %p42 = scmp.ne.s32.totalorder %s28, %s29
      %p43 = scmp.eq.s32.totalorder %s21, 1
      %p44 = por %p42, %p43
      %p46 = scmp.ne.s32.totalorder %s29, %s45
      %p47 = scmp.eq.s32.totalorder %s21, 0
      %p48 = por %p46, %p47
      %s50 = sadd.s32 %s49, 1
      %p53 = scmp.eq.s32.totalorder %s15, 1
      %p54 = scmp.ne.s32.totalorder %s49, %s51
      %p55 = scmp.eq.s32.totalorder %s15, 0
      %p56 = por %p54, %p55
      %p57 = scmp.ne.s32.totalorder %s49, %s51
      %p58 = scmp.eq.s32.totalorder %s20, 1
      %p59 = por %p57, %p58
      %p60 = scmp.ne.s32.totalorder %s51, %s52
      %p61 = scmp.eq.s32.totalorder %s20, 0
      %p62 = por %p60, %p61
      %p63 = scmp.ne.s32.totalorder %s51, %s52
      %p64 = scmp.eq.s32.totalorder %s21, 1
      %p65 = por %p63, %p64
      %p67 = scmp.ne.s32.totalorder %s52, %s66
      %p68 = scmp.eq.s32.totalorder %s21, 0
      %p69 = por %p67, %p68
      %s70 = ssub.s32 %s15, %s22
      %p71 = scmp.eq.s32.totalorder %s70, 0
      %s73 = sadd.s32 %s72, 1
      %s74 = scalar_select %p71, %s72, %s73
      %p77 = pneg %p71
      %p78 = scmp.eq.s32.totalorder %s15, 1
      %p79 = por %p77, %p78
      %p80 = scmp.ne.s32.totalorder %s72, %s75
      %p81 = scmp.eq.s32.totalorder %s15, 0
      %p82 = por %p80, %p81
      %p83 = scmp.ne.s32.totalorder %s72, %s75
      %p84 = scmp.eq.s32.totalorder %s20, 1
      %p85 = por %p83, %p84
      %p86 = scmp.ne.s32.totalorder %s75, %s76
      %p87 = scmp.eq.s32.totalorder %s20, 0
      %p88 = por %p86, %p87
      %p89 = scmp.ne.s32.totalorder %s75, %s76
      %p90 = scmp.eq.s32.totalorder %s21, 1
      %p91 = por %p89, %p90
      %p93 = scmp.ne.s32.totalorder %s76, %s92
      %p94 = scmp.eq.s32.totalorder %s21, 0
      %p95 = por %p93, %p94
      %p96 = scmp.le.s32.totalorder 1, %s15
      %p97 = scmp.lt.s32.totalorder %s15, 3
      %p98 = pnand %p96, %p97
      %p99 = pneg %p98
      // Predicated region
      $region9: #{tpu_custom_call.1} parent=5 // pred_check
        _
      $region10: #{tpu_custom_call.1} parent=5 // pred_check_branch
        %101 = sbr.rel (%p98) target = $region12
      $region11: #{tpu_custom_call.1} parent=5 // pred_region
        %s102 = ssub.s32 %s15, 1
        // Predicated region
        $region13: #{tpu_custom_call.1} parent=11 // pred_check
          %p103 = pneg %p62
        $region14: #{tpu_custom_call.1} parent=11 // pred_check_branch
          %105 = sbr.rel (%p103) target = $region16
        $region15: #{tpu_custom_call.1} parent=11 // pred_region
          %107 = vsyncadd [#allocation6], 0
          %s108 = sshll.u32 %s1, 4
          %s109 = int_to_ptr.hbm [resolvable:$true] %s108
          %s110 = sshll.u32 [#allocation5], 4
          %s111 = int_to_ptr.vmem [resolvable:$true] %s110
          %116 = dma.hbm_to_vmem [thread:$0]  %s109, 512, %s111, [#allocation6], 128, 128, 8
        $region16: #{tpu_custom_call.1} parent=11 // pred_fallthru
          _
      $region12: #{tpu_custom_call.1} parent=5 // pred_fallthru
        _
      %p117 = scmp.lt.s32.totalorder %s15, 2
      // Predicated region
      $region17: #{tpu_custom_call.1} parent=5 // pred_check
        %p118 = pneg %p117
      $region18: #{tpu_custom_call.1} parent=5 // pred_check_branch
        %120 = sbr.rel (%p118) target = $region20
      $region19: #{tpu_custom_call.1} parent=5 // pred_region
        // Predicated region
        $region21: #{tpu_custom_call.1} parent=19 // pred_check
          %p121 = pneg %p35
        $region22: #{tpu_custom_call.1} parent=19 // pred_check_branch
          %123 = sbr.rel (%p121) target = $region24
        $region23: #{tpu_custom_call.1} parent=19 // pred_region
          %s124 = sand.u32 %s25, 1
          %s125 = scalar_lea.sflag [#allocation3], %s124
          %s126 = sand.u32 %s25, 1
          %s127 = smul.addr %s126, 4
          %s128 = scalar_lea.vmem [#allocation2], %s127
          %130 = vsyncadd %s125, 0
          %s131 = smul.addr %s15, 4
          %s132 = scalar_lea.hbm %s0, %s131
          %s134 = sshll.u32 %s132, 4
          %s135 = int_to_ptr.hbm [resolvable:$true] %s134
          %s136 = sshll.u32 %s128, 4
          %s137 = int_to_ptr.vmem [resolvable:$true] %s136
          %139 = dma.hbm_to_vmem [thread:$0]  %s135, 64, %s137, %s125
        $region24: #{tpu_custom_call.1} parent=19 // pred_fallthru
          _
      $region20: #{tpu_custom_call.1} parent=5 // pred_fallthru
        _
      %p140 = scmp.le.s32.totalorder 1, %s15
      %p141 = scmp.lt.s32.totalorder %s15, 3
      %p142 = pnand %p140, %p141
      %p143 = pneg %p142
      // Predicated region
      $region25: #{tpu_custom_call.1} parent=5 // pred_check
        _
      $region26: #{tpu_custom_call.1} parent=5 // pred_check_branch
        %145 = sbr.rel (%p142) target = $region28
      $region27: #{tpu_custom_call.1} parent=5 // pred_region
        %s146 = ssub.s32 %s15, 1
        %s147 = sand.u32 %s28, 1
        %s148 = scalar_lea.sflag [#allocation3], %s147
        %s149 = sand.u32 %s28, 1
        %s150 = smul.addr %s149, 4
        %s151 = scalar_lea.vmem [#allocation2], %s150
        // Predicated region
        $region29: #{tpu_custom_call.1} parent=27 // pred_check
          %p152 = pneg %p41
        $region30: #{tpu_custom_call.1} parent=27 // pred_check_branch
          %154 = sbr.rel (%p152) target = $region32
        $region31: #{tpu_custom_call.1} parent=27 // pred_region
          %156 = dma.done %s148, 64
        $region32: #{tpu_custom_call.1} parent=27 // pred_fallthru
          _
        // Predicated region
        $region33: #{tpu_custom_call.1} parent=27 // pred_check
          %p157 = pneg %p62
        $region34: #{tpu_custom_call.1} parent=27 // pred_check_branch
          %159 = sbr.rel (%p157) target = $region36
        $region35: #{tpu_custom_call.1} parent=27 // pred_region
          %161 = dma.done [#allocation6], 512
        $region36: #{tpu_custom_call.1} parent=27 // pred_fallthru
          _
        %s162 = sand.u32 %s28, 1
        %s163 = scalar_lea.sflag [#allocation3], %s162
        %s164 = sand.u32 %s28, 1
        %s165 = smul.addr %s164, 4
        %s166 = scalar_lea.vmem [#allocation2], %s165
        %p167 = pneg %p41
        %p168 = pneg %p38
        %p169 = pneg %p62
        %p170 = pneg %p59
        %p171 = pneg %p88
        %p172 = pneg %p85
        %s173 = sand.u32 %s75, 1
        %s174 = scalar_lea.sflag [#allocation4], %s173
        %s175 = sand.u32 %s75, 1
        %s176 = smul.addr %s175, 8
        %s177 = scalar_lea.vmem [#allocation7], %s176
        %v179 = vld [vmem:[%s151] sm:$0xf]
        %v180 = vld [vmem:[#allocation5] sm:$0xff]
        %v181 = vld [vmem:[#allocation5 + $0x8] sm:$0xff]
        %v182 = vld [vmem:[#allocation5 + $0x10] sm:$0xff]
        %v183 = vld [vmem:[#allocation5 + $0x18] sm:$0xff]
        %v188 = vunpack.c.l.b16 %v180
        %v189 = vunpack.c.h.b16 %v180
        %v190 = vunpack.c.l.b16 %v181
        %v191 = vunpack.c.h.b16 %v181
        %v192 = vunpack.c.l.b16 %v182
        %v193 = vunpack.c.h.b16 %v182
        %v194 = vunpack.c.l.b16 %v183
        %v195 = vunpack.c.h.b16 %v183
        %v196 = vpack.c.b16 %v190, %v188
        %v197 = vpack.c.b16 %v191, %v189
        %v198 = vpack.c.b16 %v194, %v192
        %v199 = vpack.c.b16 %v195, %v193
        %vm204 = vcmask 261120
        %v206 = vsel %vm204, %v179, 0
        %208 = vmatpush.bf16.msra.mxu0 0
        %209 = vmatpush.bf16.msra.mxu0 0
        %210 = vmatpush.bf16.msra.mxu0 0
        %211 = vmatpush.bf16.msra.mxu0 0
        %212 = vmatpush.bf16.msra.mxu0 0
        %213 = vmatpush.bf16.msra.mxu0 0
        %214 = vmatpush.bf16.msra.mxu0 %v198
        %215 = vmatpush.bf16.msra.mxu0 %v196
        %216 = vmatmul.bf16.gmra.mxu0 %v206
        %v217 = vpop.f32.mrf.mxu0
        %v218 = vadd.f32 0.0, %v217
        %v219 = vpop.f32.mrf.mxu0
        %220 = vdwg.mxu0
        %221 = vmatpush.bf16.msra.mxu0 0
        %222 = vmatpush.bf16.msra.mxu0 0
        %223 = vmatpush.bf16.msra.mxu0 0
        %224 = vmatpush.bf16.msra.mxu0 0
        %225 = vmatpush.bf16.msra.mxu0 0
        %226 = vmatpush.bf16.msra.mxu0 0
        %227 = vmatpush.bf16.msra.mxu0 %v199
        %228 = vmatpush.bf16.msra.mxu0 %v197
        %229 = vmatmul.bf16.gmra.mxu0 %v206
        %v230 = vpop.f32.mrf.mxu0
        %v231 = vadd.f32 0.0, %v230
        %v232 = vpop.f32.mrf.mxu0
        %233 = vdwg.mxu0
        %v234 = vlaneseq
        %v235 = vshrl.u32 %v234, 7
        %v236 = vlaneseq
        %v237 = vand.u32 %v236, 127
        %vm238 = vcmp.gt.s32.totalorder %v237, %v235
        %v239 = vpack.c.bf16 %v218, %v218
        %241 = vrot.lane.b32.xlu0 %v239, 64
        %v242 = vpop.permute.xlu0 %241
        %vm243 = vcmask 130048
        %v245 = vsel %vm243, %v239, 0
        %v248 = vsel %vm243, %v242, 0
        %250 = vmatpush.bf16.xpose.msra.mxu0 0
        %251 = vmatpush.bf16.xpose.msra.mxu0 0
        %252 = vmatpush.bf16.xpose.msra.mxu0 0
        %253 = vmatpush.bf16.xpose.msra.mxu0 0
        %254 = vmatpush.bf16.xpose.msra.mxu0 0
        %255 = vmatpush.bf16.xpose.msra.mxu0 0
        %256 = vmatpush.bf16.xpose.msra.mxu0 0
        %257 = vmatpush.bf16.xpose.msra.mxu0 %v248
        %258 = vmatmul.bf16.gmra.mxu0 %v245
        %v259 = vpop.f32.mrf.mxu0
        %v260 = vadd.f32 0.0, %v259
        %v261 = vpop.f32.mrf.mxu0
        %262 = vdwg.mxu0
        %v263 = vmul.f32 %v260, 0.25
        %v264 = vsel %vm238, -inf, %v263
        %vm265 = vcmask 64512
        %v266 = vsel %vm265, %v264, -inf
        %267 = vmax.xlane.f32.xlu0 %v266
        %v268 = vpop.xlane.xlu0 %267
        %v269 = vsub.f32 %v264, %v268
        %v270 = vmul.f32 %v269, 1.442695
        %v271 = vpow.pop %v270
        %v272 = vsel %vm265, %v271, 0.0
        %273 = vadd.xlane.f32.xlu0 %v272
        %v274 = vpop.xlane.xlu0 %273
        %v275 = vrcp.pop %v274
        %v276 = vmul.f32 %v271, %v275
        %v277 = vpack.c.bf16 %v276, %v276
        %v278 = vpack.c.bf16 %v231, %v231
        %v280 = vsel %vm265, %v277, 0
        %vm282 = vcmask 1043456
        %v284 = vsel %vm282, %v278, 0
        %286 = vmatpush.bf16.msra.mxu0 0
        %287 = vmatpush.bf16.msra.mxu0 0
        %288 = vmatpush.bf16.msra.mxu0 0
        %289 = vmatpush.bf16.msra.mxu0 0
        %290 = vmatpush.bf16.msra.mxu0 0
        %291 = vmatpush.bf16.msra.mxu0 0
        %292 = vmatpush.bf16.msra.mxu0 0
        %293 = vmatpush.bf16.msra.mxu0 %v284
        %294 = vmatmul.bf16.gmra.mxu0 %v280
        %v295 = vpop.f32.mrf.mxu0
        %v296 = vadd.f32 0.0, %v295
        %v297 = vpop.f32.mrf.mxu0
        %298 = vdwg.mxu0
        %299 = vrot.lane.b32.xlu0 %v239, 112
        %v300 = vpop.permute.xlu0 %299
        %301 = vrot.lane.b32.xlu0 %v239, 48
        %v302 = vpop.permute.xlu0 %301
        %v304 = vsel %vm243, %v300, 0
        %v307 = vsel %vm243, %v302, 0
        %309 = vmatpush.bf16.xpose.msra.mxu0 0
        %310 = vmatpush.bf16.xpose.msra.mxu0 0
        %311 = vmatpush.bf16.xpose.msra.mxu0 0
        %312 = vmatpush.bf16.xpose.msra.mxu0 0
        %313 = vmatpush.bf16.xpose.msra.mxu0 0
        %314 = vmatpush.bf16.xpose.msra.mxu0 0
        %315 = vmatpush.bf16.xpose.msra.mxu0 0
        %316 = vmatpush.bf16.xpose.msra.mxu0 %v307
        %317 = vmatmul.bf16.gmra.mxu0 %v304
        %v318 = vpop.f32.mrf.mxu0
        %v319 = vadd.f32 0.0, %v318
        %v320 = vpop.f32.mrf.mxu0
        %321 = vdwg.mxu0
        %v322 = vmul.f32 %v319, 0.25
        %v323 = vsel %vm238, -inf, %v322
        %v324 = vsel %vm265, %v323, -inf
        %325 = vmax.xlane.f32.xlu0 %v324
        %v326 = vpop.xlane.xlu0 %325
        %v327 = vsub.f32 %v323, %v326
        %v328 = vmul.f32 %v327, 1.442695
        %v329 = vpow.pop %v328
        %v330 = vsel %vm265, %v329, 0.0
        %331 = vadd.xlane.f32.xlu0 %v330
        %v332 = vpop.xlane.xlu0 %331
        %v333 = vrcp.pop %v332
        %v334 = vmul.f32 %v329, %v333
        %v335 = vpack.c.bf16 %v334, %v334
        %337 = vrot.lane.b32.xlu0 %v278, 112
        %v338 = vpop.permute.xlu0 %337
        %v340 = vsel %vm265, %v335, 0
        %v343 = vsel %vm282, %v338, 0
        %345 = vmatpush.bf16.msra.mxu0 0
        %346 = vmatpush.bf16.msra.mxu0 0
        %347 = vmatpush.bf16.msra.mxu0 0
        %348 = vmatpush.bf16.msra.mxu0 0
        %349 = vmatpush.bf16.msra.mxu0 0
        %350 = vmatpush.bf16.msra.mxu0 0
        %351 = vmatpush.bf16.msra.mxu0 0
        %352 = vmatpush.bf16.msra.mxu0 %v343
        %353 = vmatmul.bf16.gmra.mxu0 %v340
        %v354 = vpop.f32.mrf.mxu0
        %v355 = vadd.f32 0.0, %v354
        %v356 = vpop.f32.mrf.mxu0
        %357 = vdwg.mxu0
        %358 = vrot.lane.b32.xlu0 %v239, 96
        %v359 = vpop.permute.xlu0 %358
        %360 = vrot.lane.b32.xlu0 %v239, 32
        %v361 = vpop.permute.xlu0 %360
        %v363 = vsel %vm243, %v359, 0
        %v366 = vsel %vm243, %v361, 0
        %368 = vmatpush.bf16.xpose.msra.mxu0 0
        %369 = vmatpush.bf16.xpose.msra.mxu0 0
        %370 = vmatpush.bf16.xpose.msra.mxu0 0
        %371 = vmatpush.bf16.xpose.msra.mxu0 0
        %372 = vmatpush.bf16.xpose.msra.mxu0 0
        %373 = vmatpush.bf16.xpose.msra.mxu0 0
        %374 = vmatpush.bf16.xpose.msra.mxu0 0
        %375 = vmatpush.bf16.xpose.msra.mxu0 %v366
        %376 = vmatmul.bf16.gmra.mxu0 %v363
        %v377 = vpop.f32.mrf.mxu0
        %v378 = vadd.f32 0.0, %v377
        %v379 = vpop.f32.mrf.mxu0
        %380 = vdwg.mxu0
        %v381 = vmul.f32 %v378, 0.25
        %v382 = vsel %vm238, -inf, %v381
        %v383 = vsel %vm265, %v382, -inf
        %384 = vmax.xlane.f32.xlu0 %v383
        %v385 = vpop.xlane.xlu0 %384
        %v386 = vsub.f32 %v382, %v385
        %v387 = vmul.f32 %v386, 1.442695
        %v388 = vpow.pop %v387
        %v389 = vsel %vm265, %v388, 0.0
        %390 = vadd.xlane.f32.xlu0 %v389
        %v391 = vpop.xlane.xlu0 %390
        %v392 = vrcp.pop %v391
        %v393 = vmul.f32 %v388, %v392
        %v394 = vpack.c.bf16 %v393, %v393
        %395 = vrot.lane.b32.xlu0 %v278, 96
        %v396 = vpop.permute.xlu0 %395
        %v398 = vsel %vm265, %v394, 0
        %v401 = vsel %vm282, %v396, 0
        %403 = vmatpush.bf16.msra.mxu0 0
        %404 = vmatpush.bf16.msra.mxu0 0
        %405 = vmatpush.bf16.msra.mxu0 0
        %406 = vmatpush.bf16.msra.mxu0 0
        %407 = vmatpush.bf16.msra.mxu0 0
        %408 = vmatpush.bf16.msra.mxu0 0
        %409 = vmatpush.bf16.msra.mxu0 0
        %410 = vmatpush.bf16.msra.mxu0 %v401
        %411 = vmatmul.bf16.gmra.mxu0 %v398
        %v412 = vpop.f32.mrf.mxu0
        %v413 = vadd.f32 0.0, %v412
        %v414 = vpop.f32.mrf.mxu0
        %415 = vdwg.mxu0
        %416 = vrot.lane.b32.xlu0 %v239, 80
        %v417 = vpop.permute.xlu0 %416
        %418 = vrot.lane.b32.xlu0 %v239, 16
        %v419 = vpop.permute.xlu0 %418
        %v421 = vsel %vm243, %v417, 0
        %v424 = vsel %vm243, %v419, 0
        %426 = vmatpush.bf16.xpose.msra.mxu0 0
        %427 = vmatpush.bf16.xpose.msra.mxu0 0
        %428 = vmatpush.bf16.xpose.msra.mxu0 0
        %429 = vmatpush.bf16.xpose.msra.mxu0 0
        %430 = vmatpush.bf16.xpose.msra.mxu0 0
        %431 = vmatpush.bf16.xpose.msra.mxu0 0
        %432 = vmatpush.bf16.xpose.msra.mxu0 0
        %433 = vmatpush.bf16.xpose.msra.mxu0 %v424
        %434 = vmatmul.bf16.gmra.mxu0 %v421
        %v435 = vpop.f32.mrf.mxu0
        %v436 = vadd.f32 0.0, %v435
        %v437 = vpop.f32.mrf.mxu0
        %438 = vdwg.mxu0
        %v439 = vmul.f32 %v436, 0.25
        %v440 = vsel %vm238, -inf, %v439
        %v441 = vsel %vm265, %v440, -inf
        %442 = vmax.xlane.f32.xlu0 %v441
        %v443 = vpop.xlane.xlu0 %442
        %v444 = vsub.f32 %v440, %v443
        %v445 = vmul.f32 %v444, 1.442695
        %v446 = vpow.pop %v445
        %v447 = vsel %vm265, %v446, 0.0
        %448 = vadd.xlane.f32.xlu0 %v447
        %v449 = vpop.xlane.xlu0 %448
        %v450 = vrcp.pop %v449
        %v451 = vmul.f32 %v446, %v450
        %v452 = vpack.c.bf16 %v451, %v451
        %453 = vrot.lane.b32.xlu0 %v278, 80
        %v454 = vpop.permute.xlu0 %453
        %v456 = vsel %vm265, %v452, 0
        %v459 = vsel %vm282, %v454, 0
        %461 = vmatpush.bf16.msra.mxu0 0
        %462 = vmatpush.bf16.msra.mxu0 0
        %463 = vmatpush.bf16.msra.mxu0 0
        %464 = vmatpush.bf16.msra.mxu0 0
        %465 = vmatpush.bf16.msra.mxu0 0
        %466 = vmatpush.bf16.msra.mxu0 0
        %467 = vmatpush.bf16.msra.mxu0 0
        %468 = vmatpush.bf16.msra.mxu0 %v459
        %469 = vmatmul.bf16.gmra.mxu0 %v456
        %v470 = vpop.f32.mrf.mxu0
        %v471 = vadd.f32 0.0, %v470
        %v472 = vpop.f32.mrf.mxu0
        %473 = vdwg.mxu0
        %475 = vrot.lane.b32.xlu0 %v355, 16
        %v476 = vpop.permute.xlu0 %475
        %479 = vrot.lane.b32.xlu0 %v413, 32
        %v480 = vpop.permute.xlu0 %479
        %483 = vrot.lane.b32.xlu0 %v471, 48
        %v484 = vpop.permute.xlu0 %483
        %v486 = vsel %vm243, %v296, %v476
        %v487 = vsel %vm204, %v486, %v480
        %vm488 = vcmask 392192
        %v489 = vsel %vm488, %v487, %v484
        %vm490 = vcmask 523264
        %491 = vst.msk [vmem:[%s177] sm:$0xff] %vm490, %v489
        %s492 = sand.u32 %s75, 1
        %s493 = scalar_lea.sflag [#allocation4], %s492
        %s494 = sand.u32 %s75, 1
        %s495 = smul.addr %s494, 8
        %s496 = scalar_lea.vmem [#allocation7], %s495
        // Predicated region
        $region37: #{tpu_custom_call.1} parent=27 // pred_check
          %p497 = pneg %p85
        $region38: #{tpu_custom_call.1} parent=27 // pred_check_branch
          %499 = sbr.rel (%p497) target = $region40
        $region39: #{tpu_custom_call.1} parent=27 // pred_region
          %501 = vsyncadd %s493, 0
          %s502 = smul.addr %s20, 8
          %s503 = scalar_lea.hbm %s2, %s502
          %s505 = sshll.u32 %s496, 4
          %s506 = int_to_ptr.vmem [resolvable:$true] %s505
          %s507 = sshll.u32 %s503, 4
          %s508 = int_to_ptr.hbm [resolvable:$true] %s507
          %510 = dma.vmem_to_hbm [thread:$0]  %s506, 128, %s508, %s493
        $region40: #{tpu_custom_call.1} parent=27 // pred_fallthru
          _
      $region28: #{tpu_custom_call.1} parent=5 // pred_fallthru
        _
      %p511 = scmp.le.s32.totalorder 2, %s15
      // Predicated region
      $region41: #{tpu_custom_call.1} parent=5 // pred_check
        %p512 = pneg %p511
      $region42: #{tpu_custom_call.1} parent=5 // pred_check_branch
        %514 = sbr.rel (%p512) target = $region44
      $region43: #{tpu_custom_call.1} parent=5 // pred_region
        %s515 = ssub.s32 %s15, 2
        // Predicated region
        $region45: #{tpu_custom_call.1} parent=43 // pred_check
          %p516 = pneg %p91
        $region46: #{tpu_custom_call.1} parent=43 // pred_check_branch
          %518 = sbr.rel (%p516) target = $region48
        $region47: #{tpu_custom_call.1} parent=43 // pred_region
          %s519 = sand.u32 %s76, 1
          %s520 = scalar_lea.sflag [#allocation4], %s519
          %s521 = sand.u32 %s76, 1
          %s522 = smul.addr %s521, 8
          %s523 = scalar_lea.vmem [#allocation7], %s522
          %525 = dma.done %s520, 128
        $region48: #{tpu_custom_call.1} parent=43 // pred_fallthru
          _
      $region44: #{tpu_custom_call.1} parent=5 // pred_fallthru
        _
    $region6: #{tpu_custom_call.1} parent=1 // loop_footer
      %s19 = sadd.s32 1, %s15
    $region7: #{tpu_custom_call.1} parent=1 // loop_footer_branch
      %14 = sbr.rel target = $region3
    $region8: #{tpu_custom_call.1} parent=1 // loop_exit
      _
    %526 = vsyncpa [#allocation3], 1
    %s527 = scalar_lea.sflag [#allocation3], 1
    %528 = vsyncpa %s527, 1
    %529 = vsyncpa [#allocation6], 1
    %530 = vsyncpa [#allocation4], 1
    %s531 = scalar_lea.sflag [#allocation4], 1
    %532 = vsyncpa %s531, 1

</llo_original>
